<compile_context>
chip_gen: v6e
topology: v6e:2x2x1
jax: 0.10.0
libtpu: 0.0.40
codegen_flags: <defaults>
</compile_context>

<pallas_src>
import jax
import jax.numpy as jnp
from jax.experimental import pallas as pl
from jax.experimental.pallas import tpu as pltpu

IN_DIM = 10
HIDDEN = 32
LN_EPS = 1e-5

BLK_B_MAX = 1024          # cap on rows per grid step (multiple of 8)

# Packed-weight slab row layout (all region starts 8-aligned, width = HIDDEN):
ROW_W1 = 0                        # rows [0, 10)  : LN-folded w1, real (10, 32)
ROW_B1 = 16                       # row  16       : LN-folded b1, real (1, 32)
ROW_W2 = ROW_B1 + 8               # rows [24, 56) : w2, real (32, 32)
ROW_B2 = ROW_W2 + HIDDEN          # row  56       : b2, real (1, 32)
SLAB_ROWS = ROW_B2 + 8            # 64


def audio_encoder_kernel(x_ref, w_ref, o_ref):
    # x_ref: (BLK, IN_DIM) f32 -- no lane padding, so no validity mask needed.
    x = x_ref[...]

    # --- LayerNorm statistics over the 10 feature lanes (biased var, eps) ---
    mean = jnp.mean(x, axis=-1, keepdims=True)
    centered = x - mean
    var = jnp.mean(centered * centered, axis=-1, keepdims=True)
    xn = centered * jax.lax.rsqrt(var + LN_EPS)          # (BLK, IN_DIM)
    # LN affine (gamma/beta) is folded into w1/b1 at parameter-pack time.

    # --- Static slices of the single VMEM-resident weight slab ---
    w1 = w_ref[ROW_W1:ROW_W1 + IN_DIM, :]                # (10, 32)
    b1 = w_ref[ROW_B1:ROW_B1 + 1, :]                     # (1, 32)
    w2 = w_ref[ROW_W2:ROW_W2 + HIDDEN, :]                # (32, 32)
    b2 = w_ref[ROW_B2:ROW_B2 + 1, :]                     # (1, 32)

    # --- Linear(10 -> 32) ---
    h = jnp.dot(xn, w1, preferred_element_type=jnp.float32) + b1   # (BLK, 32)

    # --- SiLU ---
    h = h * jax.nn.sigmoid(h)

    # --- Linear(32 -> 32) ---
    y = jnp.dot(h, w2, preferred_element_type=jnp.float32) + b2    # (BLK, 32)

    o_ref[...] = y.astype(o_ref.dtype)


def _round_up(x, m):
    return ((x + m - 1) // m) * m


def _choose_block(b):
    """Rows per grid step: >=2 steps when possible (v7x dual-TC), cap 1024."""
    b8 = _round_up(b, 8)
    if b8 <= 8:
        return 8
    return min(BLK_B_MAX, _round_up((b8 + 1) // 2, 8))


def audio_encoder_forward_batched(x, slab):
    """x: (B, IN_DIM), slab: packed weights (SLAB_ROWS, HIDDEN) -> (B, HIDDEN)."""
    B = x.shape[0]
    blk = _choose_block(B)
    Bp = _round_up(B, blk)

    xf = x.astype(jnp.float32)
    if Bp != B:
        # Zero rows only: LN on an all-zero row hits rsqrt(eps) (finite) and the
        # extra rows are sliced away below.
        xf = jnp.pad(xf, ((0, Bp - B), (0, 0)))

    out = pl.pallas_call(
        audio_encoder_kernel,
        out_shape=jax.ShapeDtypeStruct((Bp, HIDDEN), jnp.float32),
        grid=(Bp // blk,),
        in_specs=[
            # Last dim equals the full array dim (10) -> legal, no lane padding.
            pl.BlockSpec((blk, IN_DIM), lambda i: (i, 0)),
            # Constant index_map: the 8 KiB weight slab stays VMEM-resident.
            pl.BlockSpec((SLAB_ROWS, HIDDEN), lambda i: (0, 0)),
        ],
        # Narrow (32-wide) output: only real columns are written back to HBM.
        out_specs=pl.BlockSpec((blk, HIDDEN), lambda i: (i, 0)),
        compiler_params=pltpu.CompilerParams(
            dimension_semantics=("parallel",)),
    )(xf, slab)

    return out if Bp == B else out[:B]


def audio_encoder_forward(audio_embed, slab):
    """(IN_DIM,) -> (1, 1, HIDDEN): matches projector(x.unsqueeze(0).unsqueeze(0))."""
    y = audio_encoder_forward_batched(audio_embed.reshape(1, IN_DIM), slab)
    return y.reshape(1, 1, HIDDEN)


def init_params(key):
    """Synthetic params with nn-module shapes.

    PyTorch nn.Linear stores weight as (out, in); we keep (in, out) so the
    kernel computes x @ W (mathematically identical to x @ W_pt.T).
    """
    k1, k2, k3, k4, k5, k6 = jax.random.split(key, 6)
    return {
        "ln_w": 1.0 + 0.1 * jax.random.normal(k5, (IN_DIM,), jnp.float32),
        "ln_b": 0.1 * jax.random.normal(k6, (IN_DIM,), jnp.float32),
        "w1": jax.random.normal(k1, (IN_DIM, HIDDEN), jnp.float32) * 0.1,
        "b1": jax.random.normal(k2, (HIDDEN,), jnp.float32) * 0.1,
        "w2": jax.random.normal(k3, (HIDDEN, HIDDEN), jnp.float32) * 0.1,
        "b2": jax.random.normal(k4, (HIDDEN,), jnp.float32) * 0.1,
    }


def pack_params(raw):
    """Fold LN affine into Linear1 and pack everything into one (64, 32) slab."""
    ln_w, ln_b = raw["ln_w"], raw["ln_b"]
    w1, b1, w2, b2 = raw["w1"], raw["b1"], raw["w2"], raw["b2"]
    # One-time fold (not per-call): (xn*ln_w + ln_b) @ w1 + b1
    w1f = ln_w[:, None] * w1                      # (IN_DIM, HIDDEN)
    b1f = ln_b @ w1 + b1                          # (HIDDEN,)

    slab = jnp.zeros((SLAB_ROWS, HIDDEN), jnp.float32)
    slab = slab.at[ROW_W1:ROW_W1 + IN_DIM, :].set(w1f)
    slab = slab.at[ROW_B1, :].set(b1f)
    slab = slab.at[ROW_W2:ROW_W2 + HIDDEN, :].set(w2)
    slab = slab.at[ROW_B2, :].set(b2)
    return slab


def reference_forward_batched(x, raw):
    """Pure-JAX f32 reference of the un-folded PyTorch projector."""
    x = x.astype(jnp.float32)
    mean = jnp.mean(x, axis=-1, keepdims=True)
    var = jnp.mean((x - mean) ** 2, axis=-1, keepdims=True)
    xn = (x - mean) / jnp.sqrt(var + LN_EPS)
    xn = xn * raw["ln_w"] + raw["ln_b"]
    h = xn @ raw["w1"] + raw["b1"]
    h = h * jax.nn.sigmoid(h)
    return h @ raw["w2"] + raw["b2"]


if __name__ == "__main__":
    key = jax.random.PRNGKey(0)
    k_embed, k_batch, k_params = jax.random.split(key, 3)

    raw = init_params(k_params)
    slab = pack_params(raw)

    # 1) Module-equivalent single-embedding path: (10,) -> (1, 1, HIDDEN).
    #    (synthetic "genre" embedding stands in for data_dict[audio_path];
    #     uses an 8-row tile instead of padding a single token to 128 rows)
    audio_embed = jax.random.normal(k_embed, (IN_DIM,), jnp.float32)
    out1 = jax.block_until_ready(audio_encoder_forward(audio_embed, slab))
    ref1 = reference_forward_batched(
        audio_embed.reshape(1, IN_DIM), raw).reshape(1, 1, HIDDEN)
    assert out1.shape == (1, 1, HIDDEN)
    assert jnp.allclose(out1, ref1, atol=1e-4, rtol=1e-4), "single-token mismatch"

    # 2) Batched path: odd batch size exercises the row-pad tail AND a 2-step
    #    parallel grid (dual-TC shardable on v7x).
    xb = jax.random.normal(k_batch, (200, IN_DIM), jnp.float32)
    outb = jax.block_until_ready(audio_encoder_forward_batched(xb, slab))
    refb = reference_forward_batched(xb, raw)
    assert outb.shape == (200, HIDDEN)
    assert jnp.allclose(outb, refb, atol=1e-4, rtol=1e-4), "batched mismatch"

    print("KERNEL_OK")
</pallas_src>

<mosaic_0001>
module attributes {stable_mosaic.version = 11 : i64} {
  func.func @audio_encoder_kernel(%arg0: i32, %arg1: memref<8x10xf32, #tpu.memory_space<vmem>>, %arg2: memref<64x32xf32, #tpu.memory_space<vmem>>, %arg3: memref<8x32xf32, #tpu.memory_space<vmem>>) attributes {dimension_semantics = [#tpu.dimension_semantics<parallel>], iteration_bounds = array<i64: 1>, scalar_prefetch = 0 : i64, scratch_operands = 0 : i64, tpu.core_type = #tpu.core_type<tc>, window_params = [{transform_indices = @transform_0, window_bounds = array<i64: 8, 10>}, {pipeline_mode = #tpu.pipeline_mode<synchronous>, transform_indices = @transform_1, window_bounds = array<i64: 64, 32>}, {transform_indices = @transform_2, window_bounds = array<i64: 8, 32>}]} {
    %c0 = arith.constant 0 : index
    %c0_0 = arith.constant 0 : index
    %0 = vector.load %arg1[%c0, %c0_0] : memref<8x10xf32, #tpu.memory_space<vmem>>, vector<8x10xf32>
    %cst = arith.constant dense<0.000000e+00> : vector<8xf32>
    %1 = vector.multi_reduction <add>, %0, %cst [1] : vector<8x10xf32> to vector<8xf32>
    %2 = vector.shape_cast %1 : vector<8xf32> to vector<8x1xf32>
    %cst_1 = arith.constant 1.000000e+01 : f32
    %3 = vector.broadcast %cst_1 : f32 to vector<8x1xf32>
    %4 = arith.divf %2, %3 : vector<8x1xf32>
    %5 = vector.broadcast %4 : vector<8x1xf32> to vector<8x10xf32>
    %6 = arith.subf %0, %5 : vector<8x10xf32>
    %7 = arith.mulf %6, %6 : vector<8x10xf32>
    %cst_2 = arith.constant dense<0.000000e+00> : vector<8xf32>
    %8 = vector.multi_reduction <add>, %7, %cst_2 [1] : vector<8x10xf32> to vector<8xf32>
    %9 = vector.shape_cast %8 : vector<8xf32> to vector<8x1xf32>
    %cst_3 = arith.constant 1.000000e+01 : f32
    %10 = vector.broadcast %cst_3 : f32 to vector<8x1xf32>
    %11 = arith.divf %9, %10 : vector<8x1xf32>
    %cst_4 = arith.constant 9.99999974E-6 : f32
    %12 = vector.broadcast %cst_4 : f32 to vector<8x1xf32>
    %13 = arith.addf %11, %12 : vector<8x1xf32>
    %14 = math.rsqrt %13 : vector<8x1xf32>
    %15 = vector.broadcast %14 : vector<8x1xf32> to vector<8x10xf32>
    %16 = arith.mulf %6, %15 : vector<8x10xf32>
    %c0_5 = arith.constant 0 : index
    %c0_6 = arith.constant 0 : index
    %17 = vector.load %arg2[%c0_5, %c0_6] : memref<64x32xf32, #tpu.memory_space<vmem>>, vector<10x32xf32>
    %c16 = arith.constant 16 : index
    %c0_7 = arith.constant 0 : index
    %18 = vector.load %arg2[%c16, %c0_7] : memref<64x32xf32, #tpu.memory_space<vmem>>, vector<1x32xf32>
    %c24 = arith.constant 24 : index
    %c0_8 = arith.constant 0 : index
    %19 = vector.load %arg2[%c24, %c0_8] : memref<64x32xf32, #tpu.memory_space<vmem>>, vector<32x32xf32>
    %c56 = arith.constant 56 : index
    %c0_9 = arith.constant 0 : index
    %20 = vector.load %arg2[%c56, %c0_9] : memref<64x32xf32, #tpu.memory_space<vmem>>, vector<1x32xf32>
    %cst_10 = arith.constant dense<0.000000e+00> : vector<8x32xf32>
    %21 = tpu.matmul %16, %17, %cst_10 {dimension_numbers = #tpu.dot_dimension_numbers<[1], [0], [0], [1], [0, 0, 1, 1], [], []>} : vector<8x10xf32>, vector<10x32xf32>, vector<8x32xf32> -> vector<8x32xf32>
    %22 = vector.broadcast %18 : vector<1x32xf32> to vector<8x32xf32>
    %23 = arith.addf %21, %22 : vector<8x32xf32>
    %24 = arith.negf %23 : vector<8x32xf32>
    %25 = math.exp %24 : vector<8x32xf32>
    %cst_11 = arith.constant 1.000000e+00 : f32
    %26 = vector.broadcast %cst_11 : f32 to vector<8x32xf32>
    %27 = arith.addf %26, %25 : vector<8x32xf32>
    %28 = arith.divf %26, %27 : vector<8x32xf32>
    %29 = arith.mulf %23, %28 : vector<8x32xf32>
    %cst_12 = arith.constant dense<0.000000e+00> : vector<8x32xf32>
    %30 = tpu.matmul %29, %19, %cst_12 {dimension_numbers = #tpu.dot_dimension_numbers<[1], [0], [0], [1], [0, 0, 1, 1], [], []>} : vector<8x32xf32>, vector<32x32xf32>, vector<8x32xf32> -> vector<8x32xf32>
    %31 = vector.broadcast %20 : vector<1x32xf32> to vector<8x32xf32>
    %32 = arith.addf %30, %31 : vector<8x32xf32>
    %c0_13 = arith.constant 0 : index
    %c0_14 = arith.constant 0 : index
    %33 = vector.load %arg3[%c0_13, %c0_14] : memref<8x32xf32, #tpu.memory_space<vmem>>, vector<8x32xf32>
    tpu.vector_store %arg3[%c0_13, %c0_14], %32 {strides = array<i32>} : memref<8x32xf32, #tpu.memory_space<vmem>>, vector<8x32xf32>,
    return
  }
  func.func @transform_0(%arg0: i32) -> (i32, i32) {
    %c0_i32 = arith.constant 0 : i32
    %c0_i32_0 = arith.constant 0 : i32
    return %arg0, %c0_i32 : i32, i32
  }
  func.func @transform_1(%arg0: i32) -> (i32, i32) {
    %c0_i32 = arith.constant 0 : i32
    %c0_i32_0 = arith.constant 0 : i32
    %c0_i32_1 = arith.constant 0 : i32
    return %c0_i32, %c0_i32_0 : i32, i32
  }
  func.func @transform_2(%arg0: i32) -> (i32, i32) {
    %c0_i32 = arith.constant 0 : i32
    %c0_i32_0 = arith.constant 0 : i32
    return %arg0, %c0_i32 : i32, i32
  }
}

</mosaic_0001>

<llo_original>
// kernel: tpu_custom_call.1
$region0: #{tpu_custom_call.1}
  #allocation0 [shape = 'u32[]', space=smem, size = 0x4, offset = 0x4, fixed_abs, tag = 'smem constant byte address 0x4 - core index']
  #allocation1 [shape = 'u32[144,128]{1,0:T(1,128)}', space=vmem, size = 0x12000, scoped, tag = 'internal scratch']
  %s0 = inlined_call_operand.vmem [shape: f32[8,10], index: 0, kind: input, shape index: {}]
  %s1 = inlined_call_operand.vmem [shape: f32[64,32], index: 1, kind: input, shape index: {}]
  %s2 = inlined_call_operand.hbm [shape: f32[8,32], index: 2, kind: output, shape index: {}]
  %s3 = sld [smem:[#allocation0]]
  $region18: #{tpu_custom_call.1} parent=0
    _
  %s5 = ssub.s32 1, %s3
  %s6 = scalar_select 0, %s5, %s3
  $region1: #{tpu_custom_call.1} parent=0
    #allocation2 [shape = 'u8[4096]{0}', space=vmem, size = 0x1000, scoped, tag = 'output window, operand 0, single buffered']
    #allocation3 [shape = 's32[1]{0}', space=sflag, size = 0x4, scoped, tag = 'scoped memory for tpu_custom_call.1']
    %7 = vsyncpa [#allocation3], 0
    // Predicated region
    $region2: #{tpu_custom_call.1} parent=1 // pred_check
      _
    $region3: #{tpu_custom_call.1} parent=1 // pred_check_branch
      %9 = sbr.rel (0) target = $region5
    $region4: #{tpu_custom_call.1} parent=1 // pred_region
      _
    $region5: #{tpu_custom_call.1} parent=1 // pred_fallthru
      _
    // Predicated region
    $region6: #{tpu_custom_call.1} parent=1 // pred_check
      _
    $region7: #{tpu_custom_call.1} parent=1 // pred_check_branch
      %11 = sbr.rel (0) target = $region9
    $region8: #{tpu_custom_call.1} parent=1 // pred_region
      _
    $region9: #{tpu_custom_call.1} parent=1 // pred_fallthru
      _
    %v12 = vld [vmem:[%s0] sm:$0xff]
    %vm13 = vcmask 80896
    %v14 = vsel %vm13, %v12, 0.0
    %15 = vadd.xlane.f32.xlu0 %v14
    %v16 = vpop.xlane.xlu0 %15
    %v17 = vrcp.pop 10.0
    %v18 = vmul.f32 %v16, %v17
    %v19 = vsub.f32 %v12, %v18
    %v20 = vmul.f32 %v19, %v19
    %v21 = vsel %vm13, %v20, 0.0
    %22 = vadd.xlane.f32.xlu0 %v21
    %v23 = vpop.xlane.xlu0 %22
    %v24 = vmul.f32 %v23, %v17
    %v25 = vadd.f32 %v24, 1e-05
    %v26 = vrsqrt.pop %v25
    %v27 = vmul.f32 %v19, %v26
    %v28 = vld [vmem:[%s1] sm:$0xff]
    %v29 = vld [vmem:[%s1 + $0x8] sm:$0x3]
    %v30 = vld [vmem:[%s1 + $0x10] sm:$0x1]
    %v31 = vld [vmem:[%s1 + $0x18] sm:$0xff]
    %v32 = vld [vmem:[%s1 + $0x20] sm:$0xff]
    %v33 = vld [vmem:[%s1 + $0x28] sm:$0xff]
    %v34 = vld [vmem:[%s1 + $0x30] sm:$0xff]
    %v35 = vld [vmem:[%s1 + $0x38] sm:$0x1]
    %v36 = vlaneseq
    %v37 = vshrl.u32 %v36, 7
    %v38 = vsub.s32 0, %v37
    %v39 = vrot.slane %v30, %v38
    %v41 = vsel %vm13, %v27, 0
    %vm43 = vcmask 1041408
    %v45 = vsel %vm43, %v29, 0
    %47 = vmatprep.subr.mxu0 0.0
    %48 = vmatpush1.msra.mxu0 0.0
    %49 = vmatprep.subr.mxu0 0.0
    %50 = vmatpush1.msra.mxu0 0.0
    %51 = vmatprep.subr.mxu0 0.0
    %52 = vmatpush1.msra.mxu0 0.0
    %53 = vmatprep.subr.mxu0 0.0
    %54 = vmatpush1.msra.mxu0 0.0
    %55 = vmatprep.subr.mxu0 0.0
    %56 = vmatpush1.msra.mxu0 0.0
    %57 = vmatprep.subr.mxu0 0.0
    %58 = vmatpush1.msra.mxu0 0.0
    %59 = vmatprep.subr.mxu0 0.0
    %60 = vmatpush1.msra.mxu0 0.0
    %61 = vmatprep.subr.mxu0 0.0
    %62 = vmatpush1.msra.mxu0 0.0
    %63 = vmatprep.subr.mxu0 0.0
    %64 = vmatpush1.msra.mxu0 0.0
    %65 = vmatprep.subr.mxu0 0.0
    %66 = vmatpush1.msra.mxu0 0.0
    %67 = vmatprep.subr.mxu0 0.0
    %68 = vmatpush1.msra.mxu0 0.0
    %69 = vmatprep.subr.mxu0 0.0
    %70 = vmatpush1.msra.mxu0 0.0
    %71 = vmatprep.subr.mxu0 0.0
    %72 = vmatpush1.msra.mxu0 0.0
    %73 = vmatprep.subr.mxu0 0.0
    %74 = vmatpush1.msra.mxu0 0.0
    %75 = vmatprep.subr.mxu0 0.0
    %76 = vmatpush1.msra.mxu0 %v45
    %77 = vmatprep.subr.mxu0 0.0
    %78 = vmatpush1.msra.mxu0 %v28
    %79 = vmatprep.subr.mxu0 0.0
    %80 = vmatpush2.msra.mxu0 0.0
    %81 = vmatprep.subr.mxu0 0.0
    %82 = vmatpush2.msra.mxu0 0.0
    %83 = vmatprep.subr.mxu0 0.0
    %84 = vmatpush2.msra.mxu0 0.0
    %85 = vmatprep.subr.mxu0 0.0
    %86 = vmatpush2.msra.mxu0 0.0
    %87 = vmatprep.subr.mxu0 0.0
    %88 = vmatpush2.msra.mxu0 0.0
    %89 = vmatprep.subr.mxu0 0.0
    %90 = vmatpush2.msra.mxu0 0.0
    %91 = vmatprep.subr.mxu0 0.0
    %92 = vmatpush2.msra.mxu0 0.0
    %93 = vmatprep.subr.mxu0 0.0
    %94 = vmatpush2.msra.mxu0 0.0
    %95 = vmatprep.subr.mxu0 0.0
    %96 = vmatpush2.msra.mxu0 0.0
    %97 = vmatprep.subr.mxu0 0.0
    %98 = vmatpush2.msra.mxu0 0.0
    %99 = vmatprep.subr.mxu0 0.0
    %100 = vmatpush2.msra.mxu0 0.0
    %101 = vmatprep.subr.mxu0 0.0
    %102 = vmatpush2.msra.mxu0 0.0
    %103 = vmatprep.subr.mxu0 0.0
    %104 = vmatpush2.msra.mxu0 0.0
    %105 = vmatprep.subr.mxu0 0.0
    %106 = vmatpush2.msra.mxu0 0.0
    %107 = vmatprep.subr.mxu0 0.0
    %108 = vmatpush2.msra.mxu0 0.0
    %109 = vmatprep.subr.mxu0 0.0
    %110 = vmatpush2.msra.mxu0 0.0
    %111 = vmatprep.mubr.f32.mxu0 0.0
    %112 = vmatmul.mubr.f32.gmra.mxu0 %v41
    %v113 = vpop.f32.mrf.mxu0
    %v114 = vadd.f32 %v39, %v113
    %v115 = vpop.f32.mrf.mxu0
    %116 = vdwg.mxu0
    %v117 = vxor.u32 %v114, 2147483648
    %v118 = vmul.f32 %v117, 1.442695
    %v119 = vpow.pop %v118
    %v120 = vadd.f32 %v119, 1.0
    %v121 = vrcp.pop %v120
    %v122 = vmul.f32 1.0, %v121
    %v123 = vmul.f32 %v114, %v122
    %v124 = vlaneseq
    %v125 = vshrl.u32 %v124, 7
    %v126 = vsub.s32 0, %v125
    %v127 = vrot.slane %v35, %v126
    %vm128 = vcmask 261120
    %v130 = vsel %vm128, %v123, 0
    %132 = vmatprep.subr.mxu0 0.0
    %133 = vmatpush1.msra.mxu0 0.0
    %134 = vmatprep.subr.mxu0 0.0
    %135 = vmatpush1.msra.mxu0 0.0
    %136 = vmatprep.subr.mxu0 0.0
    %137 = vmatpush1.msra.mxu0 0.0
    %138 = vmatprep.subr.mxu0 0.0
    %139 = vmatpush1.msra.mxu0 0.0
    %140 = vmatprep.subr.mxu0 0.0
    %141 = vmatpush1.msra.mxu0 0.0
    %142 = vmatprep.subr.mxu0 0.0
    %143 = vmatpush1.msra.mxu0 0.0
    %144 = vmatprep.subr.mxu0 0.0
    %145 = vmatpush1.msra.mxu0 0.0
    %146 = vmatprep.subr.mxu0 0.0
    %147 = vmatpush1.msra.mxu0 0.0
    %148 = vmatprep.subr.mxu0 0.0
    %149 = vmatpush1.msra.mxu0 0.0
    %150 = vmatprep.subr.mxu0 0.0
    %151 = vmatpush1.msra.mxu0 0.0
    %152 = vmatprep.subr.mxu0 0.0
    %153 = vmatpush1.msra.mxu0 0.0
    %154 = vmatprep.subr.mxu0 0.0
    %155 = vmatpush1.msra.mxu0 0.0
    %156 = vmatprep.subr.mxu0 0.0
    %157 = vmatpush1.msra.mxu0 %v34
    %158 = vmatprep.subr.mxu0 0.0
    %159 = vmatpush1.msra.mxu0 %v33
    %160 = vmatprep.subr.mxu0 0.0
    %161 = vmatpush1.msra.mxu0 %v32
    %162 = vmatprep.subr.mxu0 0.0
    %163 = vmatpush1.msra.mxu0 %v31
    %164 = vmatprep.subr.mxu0 0.0
    %165 = vmatpush2.msra.mxu0 0.0
    %166 = vmatprep.subr.mxu0 0.0
    %167 = vmatpush2.msra.mxu0 0.0
    %168 = vmatprep.subr.mxu0 0.0
    %169 = vmatpush2.msra.mxu0 0.0
    %170 = vmatprep.subr.mxu0 0.0
    %171 = vmatpush2.msra.mxu0 0.0
    %172 = vmatprep.subr.mxu0 0.0
    %173 = vmatpush2.msra.mxu0 0.0
    %174 = vmatprep.subr.mxu0 0.0
    %175 = vmatpush2.msra.mxu0 0.0
    %176 = vmatprep.subr.mxu0 0.0
    %177 = vmatpush2.msra.mxu0 0.0
    %178 = vmatprep.subr.mxu0 0.0
    %179 = vmatpush2.msra.mxu0 0.0
    %180 = vmatprep.subr.mxu0 0.0
    %181 = vmatpush2.msra.mxu0 0.0
    %182 = vmatprep.subr.mxu0 0.0
    %183 = vmatpush2.msra.mxu0 0.0
    %184 = vmatprep.subr.mxu0 0.0
    %185 = vmatpush2.msra.mxu0 0.0
    %186 = vmatprep.subr.mxu0 0.0
    %187 = vmatpush2.msra.mxu0 0.0
    %188 = vmatprep.subr.mxu0 0.0
    %189 = vmatpush2.msra.mxu0 0.0
    %190 = vmatprep.subr.mxu0 0.0
    %191 = vmatpush2.msra.mxu0 0.0
    %192 = vmatprep.subr.mxu0 0.0
    %193 = vmatpush2.msra.mxu0 0.0
    %194 = vmatprep.subr.mxu0 0.0
    %195 = vmatpush2.msra.mxu0 0.0
    %196 = vmatprep.mubr.f32.mxu0 0.0
    %197 = vmatmul.mubr.f32.gmra.mxu0 %v130
    %v198 = vpop.f32.mrf.mxu0
    %v199 = vadd.f32 %v127, %v198
    %v200 = vpop.f32.mrf.mxu0
    %201 = vdwg.mxu0
    %202 = vst.msk [vmem:[#allocation2] sm:$0xff] %vm128, %v199
    // Predicated region
    $region10: #{tpu_custom_call.1} parent=1 // pred_check
      _
    $region11: #{tpu_custom_call.1} parent=1 // pred_check_branch
      %204 = sbr.rel (0) target = $region13
    $region12: #{tpu_custom_call.1} parent=1 // pred_region
      %s206 = ssub.s32 128, 128
      %207 = vsyncadd [#allocation3], %s206
      %s209 = sshll.u32 [#allocation2], 4
      %s210 = int_to_ptr.vmem [resolvable:$true] %s209
      %212 = dma.vmem_to_hbm [thread:$0]  %s210, 128, %s2, [#allocation3]
    $region13: #{tpu_custom_call.1} parent=1 // pred_fallthru
      _
    // Predicated region
    $region14: #{tpu_custom_call.1} parent=1 // pred_check
      _
    $region15: #{tpu_custom_call.1} parent=1 // pred_check_branch
      %214 = sbr.rel (0) target = $region17
    $region16: #{tpu_custom_call.1} parent=1 // pred_region
      %215 = dma.done [#allocation3], 128
    $region17: #{tpu_custom_call.1} parent=1 // pred_fallthru
      _
    %216 = vsyncpa [#allocation3], 1

</llo_original>
